<compile_context>
chip_gen: v6e
topology: v6e:2x2x1
jax: 0.10.0
libtpu: 0.0.40
codegen_flags: <defaults>
</compile_context>

<pallas_src>
import functools
from typing import NamedTuple

import jax
import jax.numpy as jnp
from jax.experimental import pallas as pl
from jax.experimental.pallas import tpu as pltpu


def _round_up(v, m):
    return ((v + m - 1) // m) * m


@functools.lru_cache(maxsize=1)
def _vmem_capacity_bytes():
    """Per-core VMEM capacity; falls back to the smallest (v7x, 64 MiB)."""
    try:
        return int(pltpu.get_tpu_info().vmem_capacity_bytes)
    except Exception:
        return 64 * 1024 * 1024


def _choose_tile(n, tile):
    """Tile size: multiple of 128, and >= 2 row tiles when possible (v7x megacore)."""
    n128 = _round_up(max(n, 1), 128)
    t = min(_round_up(tile, 128), n128)
    if t >= n128 and n128 >= 256:
        t = _round_up(n128 // 2, 128)
    n_p = _round_up(n128, t)
    return t, n_p


# ---------------------------------------------------------------------------
# Graph-static preprocessing (run once per graph)
# ---------------------------------------------------------------------------
class GCNGraph(NamedTuple):
    adj_i8: jax.Array      # [N_p, N_p] int8 padded adjacency (counts)
    kcols: jax.Array       # [gm, max_k] int32 compacted nonzero k-block indices
    kcount: jax.Array      # [gm] int32 number of nonzero k-blocks per row tile
    n: int                 # original node count
    tile: int              # tile size t
    nnz_blocks: int        # total nonzero (t, t) adjacency blocks


def prepare_graph(adj, *, tile=1024):
    """Pad + cast the adjacency to int8 and build compacted block indices.

    adj[dst, src] = number of edges src -> dst (nonnegative integers <= 127).
    Runs eagerly because the compacted grid extent depends on the data.
    """
    n = int(adj.shape[0])
    t, n_p = _choose_tile(n, tile)
    gm = gk = n_p // t

    adj_i8 = jnp.zeros((n_p, n_p), jnp.int8).at[:n, :n].set(adj.astype(jnp.int8))

    # Block occupancy straight from the int8 array (no f32 N^2 temporary).
    occ = (adj_i8.reshape(gm, t, gk, t) != 0).any(axis=(1, 3))        # [gm, gk]
    kcount = occ.sum(axis=1).astype(jnp.int32)                        # [gm]
    nnz_blocks = int(kcount.sum())
    max_k = max(int(jnp.max(kcount)), 1)

    # Nonzero block indices first (ascending k), padded by repeating the last
    # valid index so padded grid steps re-use the same block -> no DMA.
    order = jnp.argsort(jnp.logical_not(occ), axis=1, stable=True).astype(jnp.int32)
    col = jnp.arange(gk, dtype=jnp.int32)[None, :]
    last = jnp.maximum(kcount[:, None] - 1, 0)
    fill = jnp.take_along_axis(order, last, axis=1)
    kcols = jnp.where(col < kcount[:, None], order, fill)[:, :max_k]

    return GCNGraph(adj_i8, kcols, kcount, n, t, nnz_blocks)


# ---------------------------------------------------------------------------
# Kernels
# ---------------------------------------------------------------------------
def _tile_dot(kcols_ref, adj_ref, feat_ref, i, k, *, feat_resident, t):
    a = adj_ref[...].astype(jnp.bfloat16)          # int8 -> bf16 in VPU slack
    if feat_resident:
        kc = kcols_ref[i, k]
        start = pl.multiple_of(kc * t, 128)
        f = feat_ref[pl.ds(start, t), :]
    else:
        f = feat_ref[...]
    return jnp.dot(a, f, preferred_element_type=jnp.float32)


def _gcn_agg_transform_kernel(kcols_ref, kcount_ref, adj_ref, feat_ref, w_ref,
                              b_ref, o_ref, acc_ref, *, feat_resident, t):
    """out[i] = (sum over nonzero blocks adj[i, kc] @ x[kc]) @ W + b."""
    i = pl.program_id(0)
    k = pl.program_id(1)
    cnt = kcount_ref[i]

    def tile_dot():
        return _tile_dot(kcols_ref, adj_ref, feat_ref, i, k,
                         feat_resident=feat_resident, t=t)

    @pl.when(jnp.logical_and(k == 0, cnt > 0))
    def _first():                       # direct store: skip zero-init pass
        acc_ref[...] = tile_dot()

    @pl.when(jnp.logical_and(k == 0, cnt == 0))
    def _empty_row():
        acc_ref[...] = jnp.zeros_like(acc_ref)

    @pl.when(jnp.logical_and(k > 0, k < cnt))
    def _accumulate():
        acc_ref[...] += tile_dot()

    @pl.when(k == pl.num_programs(1) - 1)
    def _finalize():
        # f32 accumulator x f32 weights: keeps the linear transform exact-ish.
        out = jnp.dot(acc_ref[...], w_ref[...], preferred_element_type=jnp.float32)
        o_ref[...] = (out + b_ref[...]).astype(o_ref.dtype)


def _gcn_agg_bias_kernel(kcols_ref, kcount_ref, adj_ref, feat_ref, b_ref,
                         o_ref, acc_ref, *, feat_resident, t):
    """out[i] = (sum over nonzero blocks adj[i, kc] @ z[kc]) + b  (z = x W^T)."""
    i = pl.program_id(0)
    k = pl.program_id(1)
    cnt = kcount_ref[i]

    def tile_dot():
        return _tile_dot(kcols_ref, adj_ref, feat_ref, i, k,
                         feat_resident=feat_resident, t=t)

    @pl.when(jnp.logical_and(k == 0, cnt > 0))
    def _first():
        acc_ref[...] = tile_dot()

    @pl.when(jnp.logical_and(k == 0, cnt == 0))
    def _empty_row():
        acc_ref[...] = jnp.zeros_like(acc_ref)

    @pl.when(jnp.logical_and(k > 0, k < cnt))
    def _accumulate():
        acc_ref[...] += tile_dot()

    @pl.when(k == pl.num_programs(1) - 1)
    def _finalize():
        o_ref[...] = (acc_ref[...] + b_ref[...]).astype(o_ref.dtype)


# ---------------------------------------------------------------------------
# Forward wrapper
# ---------------------------------------------------------------------------
@functools.partial(
    jax.jit,
    static_argnames=("n", "tile", "nnz_blocks", "force_feat_resident"))
def _gcn_forward(adj_i8, kcols, kcount, x, w_t, b, *,
                 n, tile, nnz_blocks, force_feat_resident=None):
    t = tile
    n_p = adj_i8.shape[0]
    gm = n_p // t
    max_k = kcols.shape[1]
    f_in = x.shape[1]
    f_out = w_t.shape[1]
    out_dtype = x.dtype
    itemsize_out = jnp.dtype(out_dtype).itemsize

    # Association switch: run the O(N^2 * F) aggregation over min(F_in, F_out).
    transform_first = f_out < f_in
    if transform_first:
        # bf16 MXU matmul with f32 accumulation (fast path; result is bf16 anyway).
        feat = jnp.dot(x.astype(jnp.bfloat16), w_t.astype(jnp.bfloat16),
                       preferred_element_type=jnp.float32)           # [N, F_out]
        f_feat = f_out
    else:
        feat = x
        f_feat = f_in

    # Lane-dense padding of the feature dims.
    f_feat_p = _round_up(f_feat, 128)
    f_out_p = _round_up(f_out, 128)

    feat_p = jnp.zeros((n_p, f_feat_p), jnp.bfloat16).at[:n, :f_feat].set(
        feat.astype(jnp.bfloat16))
    b_p = jnp.zeros((1, f_out_p), jnp.float32).at[0, :f_out].set(
        b.reshape(-1).astype(jnp.float32))

    vmem_cap = _vmem_capacity_bytes()
    if force_feat_resident is None:
        # Keep features fully VMEM-resident when 2x buffers fit a small budget.
        feat_resident = (2 * n_p * f_feat_p * 2) <= (vmem_cap // 8)
    else:
        feat_resident = bool(force_feat_resident)

    # Index maps; the two scalar-prefetched refs arrive as trailing args.
    adj_idx = lambda i, k, kcols_ref, kcount_ref: (i, kcols_ref[i, k])
    out_idx = lambda i, k, kcols_ref, kcount_ref: (i, 0)
    fixed_idx = lambda i, k, kcols_ref, kcount_ref: (0, 0)
    feat_tiled_idx = lambda i, k, kcols_ref, kcount_ref: (kcols_ref[i, k], 0)

    if feat_resident:
        feat_spec = pl.BlockSpec((n_p, f_feat_p), fixed_idx)
        feat_blk = n_p * f_feat_p * 2
    else:
        feat_spec = pl.BlockSpec((t, f_feat_p), feat_tiled_idx)
        feat_blk = t * f_feat_p * 2

    if transform_first:
        kernel = functools.partial(_gcn_agg_bias_kernel,
                                   feat_resident=feat_resident, t=t)
        in_arrays = (adj_i8, feat_p, b_p)
        in_specs = [
            pl.BlockSpec((t, t), adj_idx),
            feat_spec,
            pl.BlockSpec((1, f_out_p), fixed_idx),
        ]
        w_blk = 0
        flops = 2 * nnz_blocks * t * t * f_feat_p
    else:
        # Weights stay f32 (tiny) so the finalize matmul keeps full precision.
        w_p = jnp.zeros((f_feat_p, f_out_p), jnp.float32).at[:f_in, :f_out].set(
            w_t.astype(jnp.float32))
        kernel = functools.partial(_gcn_agg_transform_kernel,
                                   feat_resident=feat_resident, t=t)
        in_arrays = (adj_i8, feat_p, w_p, b_p)
        in_specs = [
            pl.BlockSpec((t, t), adj_idx),
            feat_spec,
            pl.BlockSpec((f_feat_p, f_out_p), fixed_idx),
            pl.BlockSpec((1, f_out_p), fixed_idx),
        ]
        w_blk = f_feat_p * f_out_p * 4
        flops = 2 * nnz_blocks * t * t * f_feat_p + 2 * n_p * f_feat_p * f_out_p

    # VMEM budget from actual block sizes (2 buffers per pipelined operand),
    # capped at 75% of the physical per-core VMEM (safe on v7x's 64 MiB).
    adj_blk = t * t * 1
    out_blk = t * f_out_p * itemsize_out
    acc_blk = t * f_feat_p * 4
    needed = 2 * (adj_blk + feat_blk + w_blk + f_out_p * 4 + out_blk) + acc_blk
    vmem_limit = int(min(max(needed + (4 << 20), 32 << 20), (vmem_cap * 3) // 4))

    bytes_accessed = (nnz_blocks * adj_blk
                      + (n_p * f_feat_p * 2 if feat_resident
                         else nnz_blocks * t * f_feat_p * 2)
                      + w_blk + f_out_p * 4
                      + n_p * f_out_p * itemsize_out)

    out_full = pl.pallas_call(
        kernel,
        out_shape=jax.ShapeDtypeStruct((n_p, f_out_p), out_dtype),
        grid_spec=pltpu.PrefetchScalarGridSpec(
            num_scalar_prefetch=2,
            grid=(gm, max_k),
            in_specs=in_specs,
            out_specs=pl.BlockSpec((t, f_out_p), out_idx),
            scratch_shapes=[pltpu.VMEM((t, f_feat_p), jnp.float32)],
        ),
        compiler_params=pltpu.CompilerParams(
            dimension_semantics=("parallel", "arbitrary"),
            vmem_limit_bytes=vmem_limit,
        ),
        cost_estimate=pl.CostEstimate(
            flops=int(flops), transcendentals=0,
            bytes_accessed=int(bytes_accessed)),
    )(kcols, kcount, *in_arrays)

    return out_full[:n, :f_out]


def gcn_layer(graph, x, w_t, b, *, feat_resident=None):
    """GCN layer forward: out = (A @ x) @ W^T + b.

    graph : GCNGraph from prepare_graph(adj) (graph-static, reuse across layers)
    x     : [N, F_in]      node features
    w_t   : [F_in, F_out]  transposed Linear weight (W^T)
    b     : [F_out]        Linear bias
    """
    assert x.shape[0] == graph.n, "feature row count must match the graph"
    return _gcn_forward(graph.adj_i8, graph.kcols, graph.kcount, x, w_t, b,
                        n=graph.n, tile=graph.tile, nnz_blocks=graph.nnz_blocks,
                        force_feat_resident=feat_resident)


# ---------------------------------------------------------------------------
# Self-test
# ---------------------------------------------------------------------------
if __name__ == "__main__":
    key = jax.random.PRNGKey(0)
    k_x, k_w1, k_b1, k_w2, k_b2 = jax.random.split(key, 5)

    N = 8
    IN_FEATS = 16
    HID_FEATS = 32

    # Small synthetic directed graph (src -> dst edge list).
    src = jnp.array([0, 1, 2, 3, 4, 5, 6, 7, 0, 2, 4, 6], dtype=jnp.int32)
    dst = jnp.array([1, 2, 3, 4, 5, 6, 7, 0, 4, 6, 0, 2], dtype=jnp.int32)
    adj = jnp.zeros((N, N), jnp.float32).at[dst, src].add(1.0)

    graph = prepare_graph(adj)      # graph-static prep, done once, shared by layers

    x = jax.random.normal(k_x, (N, IN_FEATS), dtype=jnp.float32)

    def linear_params(kw, kb, fin, fout):
        bound = 1.0 / (fin ** 0.5)
        w = jax.random.uniform(kw, (fout, fin), jnp.float32, -bound, bound)
        bias = jax.random.uniform(kb, (fout,), jnp.float32, -bound, bound)
        return w.T, bias                      # [F_in, F_out], [F_out]

    # Layer 1: 16 -> 32 exercises the aggregate-then-transform path.
    w1_t, b1 = linear_params(k_w1, k_b1, IN_FEATS, HID_FEATS)
    # Layer 2: 32 -> 16 exercises the transform-first (F_out < F_in) path.
    w2_t, b2 = linear_params(k_w2, k_b2, HID_FEATS, IN_FEATS)

    out1 = jax.block_until_ready(gcn_layer(graph, x, w1_t, b1))
    ref1 = (adj @ x) @ w1_t + b1[None, :]
    assert out1.shape == (N, HID_FEATS)
    assert jnp.allclose(out1, ref1, atol=5e-2, rtol=5e-2), \
        float(jnp.max(jnp.abs(out1 - ref1)))

    out2 = jax.block_until_ready(gcn_layer(graph, out1, w2_t, b2))
    ref2 = (adj @ out1) @ w2_t + b2[None, :]
    assert out2.shape == (N, IN_FEATS)
    assert jnp.allclose(out2, ref2, atol=5e-2, rtol=5e-2), \
        float(jnp.max(jnp.abs(out2 - ref2)))

    # Also exercise the streamed (non-VMEM-resident) feature path.
    out3 = jax.block_until_ready(gcn_layer(graph, x, w1_t, b1, feat_resident=False))
    assert jnp.allclose(out3, ref1, atol=5e-2, rtol=5e-2), \
        float(jnp.max(jnp.abs(out3 - ref1)))

    print("KERNEL_OK")
</pallas_src>

<mosaic_0001>
module attributes {stable_mosaic.version = 11 : i64} {
  func.func @_gcn_agg_transform_kernel(%arg0: i32, %arg1: i32, %arg2: memref<1x1xi32, #tpu.memory_space<smem>>, %arg3: memref<1xi32, #tpu.memory_space<smem>>, %arg4: memref<128x128xi8, #tpu.memory_space<vmem>>, %arg5: memref<128x128xbf16, #tpu.memory_space<vmem>>, %arg6: memref<128x128xf32, #tpu.memory_space<vmem>>, %arg7: memref<1x128xf32, #tpu.memory_space<vmem>>, %arg8: memref<128x128xf32, #tpu.memory_space<vmem>>, %arg9: memref<128x128xf32, #tpu.memory_space<vmem>>) attributes {dimension_semantics = [#tpu.dimension_semantics<parallel>, #tpu.dimension_semantics<arbitrary>], iteration_bounds = array<i64: 1, 1>, scalar_prefetch = 2 : i64, scratch_operands = 1 : i64, tpu.core_type = #tpu.core_type<tc>, window_params = [{transform_indices = @transform_0, window_bounds = array<i64: 128, 128>}, {pipeline_mode = #tpu.pipeline_mode<synchronous>, transform_indices = @transform_1, window_bounds = array<i64: 128, 128>}, {pipeline_mode = #tpu.pipeline_mode<synchronous>, transform_indices = @transform_2, window_bounds = array<i64: 128, 128>}, {pipeline_mode = #tpu.pipeline_mode<synchronous>, transform_indices = @transform_3, window_bounds = array<i64: 1, 128>}, {transform_indices = @transform_4, window_bounds = array<i64: 128, 128>}]} {
    %0 = arith.index_cast %arg0 : i32 to index
    %1 = memref.load %arg3[%0] : memref<1xi32, #tpu.memory_space<smem>>
    %c0_i32 = arith.constant 0 : i32
    %2 = arith.cmpi eq, %arg1, %c0_i32 : i32
    %c0_i32_0 = arith.constant 0 : i32
    %3 = arith.cmpi sgt, %1, %c0_i32_0 : i32
    %4 = arith.andi %2, %3 : i1
    %5 = arith.extui %4 : i1 to i32
    %c0_i32_1 = arith.constant 0 : i32
    %6 = arith.cmpi ne, %5, %c0_i32_1 : i32
    scf.if %6 {
      %c0 = arith.constant 0 : index
      %c0_9 = arith.constant 0 : index
      %20 = vector.load %arg4[%c0, %c0_9] : memref<128x128xi8, #tpu.memory_space<vmem>>, vector<128x128xi8>
      %21 = arith.sitofp %20 : vector<128x128xi8> to vector<128x128xbf16>
      %22 = arith.index_cast %arg0 : i32 to index
      %23 = arith.index_cast %arg1 : i32 to index
      %24 = memref.load %arg2[%22, %23] : memref<1x1xi32, #tpu.memory_space<smem>>
      %c128_i32 = arith.constant 128 : i32
      %25 = arith.muli %24, %c128_i32 : i32
      %26 = tpu.assume_multiple %25, 128 : i32
      %27 = arith.index_cast %26 : i32 to index
      %c0_10 = arith.constant 0 : index
      %28 = vector.load %arg5[%27, %c0_10] : memref<128x128xbf16, #tpu.memory_space<vmem>>, vector<128x128xbf16>
      %cst = arith.constant dense<0.000000e+00> : vector<128x128xf32>
      %29 = tpu.matmul %21, %28, %cst {dimension_numbers = #tpu.dot_dimension_numbers<[1], [0], [0], [1], [0, 0, 1, 1], [], []>} : vector<128x128xbf16>, vector<128x128xbf16>, vector<128x128xf32> -> vector<128x128xf32>
      %c0_11 = arith.constant 0 : index
      %c0_12 = arith.constant 0 : index
      %30 = vector.load %arg9[%c0_11, %c0_12] : memref<128x128xf32, #tpu.memory_space<vmem>>, vector<128x128xf32>
      tpu.vector_store %arg9[%c0_11, %c0_12], %29 {strides = array<i32>} : memref<128x128xf32, #tpu.memory_space<vmem>>, vector<128x128xf32>,
    } else {
    }
    %c0_i32_2 = arith.constant 0 : i32
    %7 = arith.cmpi eq, %arg1, %c0_i32_2 : i32
    %c0_i32_3 = arith.constant 0 : i32
    %8 = arith.cmpi eq, %1, %c0_i32_3 : i32
    %9 = arith.andi %7, %8 : i1
    %10 = arith.extui %9 : i1 to i32
    %c0_i32_4 = arith.constant 0 : i32
    %11 = arith.cmpi ne, %10, %c0_i32_4 : i32
    scf.if %11 {
      %cst = arith.constant 0.000000e+00 : f32
      %20 = vector.broadcast %cst : f32 to vector<128x128xf32>
      %c0 = arith.constant 0 : index
      %c0_9 = arith.constant 0 : index
      %21 = vector.load %arg9[%c0, %c0_9] : memref<128x128xf32, #tpu.memory_space<vmem>>, vector<128x128xf32>
      tpu.vector_store %arg9[%c0, %c0_9], %20 {strides = array<i32>} : memref<128x128xf32, #tpu.memory_space<vmem>>, vector<128x128xf32>,
    } else {
    }
    %c0_i32_5 = arith.constant 0 : i32
    %12 = arith.cmpi sgt, %arg1, %c0_i32_5 : i32
    %13 = arith.cmpi slt, %arg1, %1 : i32
    %14 = arith.andi %12, %13 : i1
    %15 = arith.extui %14 : i1 to i32
    %c0_i32_6 = arith.constant 0 : i32
    %16 = arith.cmpi ne, %15, %c0_i32_6 : i32
    scf.if %16 {
      %c0 = arith.constant 0 : index
      %c0_9 = arith.constant 0 : index
      %20 = vector.load %arg9[%c0, %c0_9] : memref<128x128xf32, #tpu.memory_space<vmem>>, vector<128x128xf32>
      %c0_10 = arith.constant 0 : index
      %c0_11 = arith.constant 0 : index
      %21 = vector.load %arg4[%c0_10, %c0_11] : memref<128x128xi8, #tpu.memory_space<vmem>>, vector<128x128xi8>
      %22 = arith.sitofp %21 : vector<128x128xi8> to vector<128x128xbf16>
      %23 = arith.index_cast %arg0 : i32 to index
      %24 = arith.index_cast %arg1 : i32 to index
      %25 = memref.load %arg2[%23, %24] : memref<1x1xi32, #tpu.memory_space<smem>>
      %c128_i32 = arith.constant 128 : i32
      %26 = arith.muli %25, %c128_i32 : i32
      %27 = tpu.assume_multiple %26, 128 : i32
      %28 = arith.index_cast %27 : i32 to index
      %c0_12 = arith.constant 0 : index
      %29 = vector.load %arg5[%28, %c0_12] : memref<128x128xbf16, #tpu.memory_space<vmem>>, vector<128x128xbf16>
      %cst = arith.constant dense<0.000000e+00> : vector<128x128xf32>
      %30 = tpu.matmul %22, %29, %cst {dimension_numbers = #tpu.dot_dimension_numbers<[1], [0], [0], [1], [0, 0, 1, 1], [], []>} : vector<128x128xbf16>, vector<128x128xbf16>, vector<128x128xf32> -> vector<128x128xf32>
      %31 = arith.addf %20, %30 : vector<128x128xf32>
      %c0_13 = arith.constant 0 : index
      %c0_14 = arith.constant 0 : index
      %32 = vector.load %arg9[%c0_13, %c0_14] : memref<128x128xf32, #tpu.memory_space<vmem>>, vector<128x128xf32>
      tpu.vector_store %arg9[%c0_13, %c0_14], %31 {strides = array<i32>} : memref<128x128xf32, #tpu.memory_space<vmem>>, vector<128x128xf32>,
    } else {
    }
    %c0_i32_7 = arith.constant 0 : i32
    %17 = arith.cmpi eq, %arg1, %c0_i32_7 : i32
    %18 = arith.extui %17 : i1 to i32
    %c0_i32_8 = arith.constant 0 : i32
    %19 = arith.cmpi ne, %18, %c0_i32_8 : i32
    scf.if %19 {
      %c0 = arith.constant 0 : index
      %c0_9 = arith.constant 0 : index
      %20 = vector.load %arg9[%c0, %c0_9] : memref<128x128xf32, #tpu.memory_space<vmem>>, vector<128x128xf32>
      %c0_10 = arith.constant 0 : index
      %c0_11 = arith.constant 0 : index
      %21 = vector.load %arg6[%c0_10, %c0_11] : memref<128x128xf32, #tpu.memory_space<vmem>>, vector<128x128xf32>
      %cst = arith.constant dense<0.000000e+00> : vector<128x128xf32>
      %22 = tpu.matmul %20, %21, %cst {dimension_numbers = #tpu.dot_dimension_numbers<[1], [0], [0], [1], [0, 0, 1, 1], [], []>} : vector<128x128xf32>, vector<128x128xf32>, vector<128x128xf32> -> vector<128x128xf32>
      %c0_12 = arith.constant 0 : index
      %c0_13 = arith.constant 0 : index
      %23 = vector.load %arg7[%c0_12, %c0_13] : memref<1x128xf32, #tpu.memory_space<vmem>>, vector<1x128xf32>
      %24 = vector.broadcast %23 : vector<1x128xf32> to vector<128x128xf32>
      %25 = arith.addf %22, %24 : vector<128x128xf32>
      %c0_14 = arith.constant 0 : index
      %c0_15 = arith.constant 0 : index
      %26 = vector.load %arg8[%c0_14, %c0_15] : memref<128x128xf32, #tpu.memory_space<vmem>>, vector<128x128xf32>
      tpu.vector_store %arg8[%c0_14, %c0_15], %25 {strides = array<i32>} : memref<128x128xf32, #tpu.memory_space<vmem>>, vector<128x128xf32>,
    } else {
    }
    return
  }
  func.func @transform_0(%arg0: i32, %arg1: i32, %arg2: memref<1x1xi32, #tpu.memory_space<smem>>, %arg3: memref<1xi32, #tpu.memory_space<smem>>) -> (i32, i32) {
    %0 = arith.index_cast %arg0 : i32 to index
    %1 = arith.index_cast %arg1 : i32 to index
    %2 = memref.load %arg2[%0, %1] : memref<1x1xi32, #tpu.memory_space<smem>>
    %c0_i32 = arith.constant 0 : i32
    return %arg0, %2 : i32, i32
  }
  func.func @transform_1(%arg0: i32, %arg1: i32, %arg2: memref<1x1xi32, #tpu.memory_space<smem>>, %arg3: memref<1xi32, #tpu.memory_space<smem>>) -> (i32, i32) {
    %c0_i32 = arith.constant 0 : i32
    %c0_i32_0 = arith.constant 0 : i32
    %c0_i32_1 = arith.constant 0 : i32
    return %c0_i32, %c0_i32_0 : i32, i32
  }
  func.func @transform_2(%arg0: i32, %arg1: i32, %arg2: memref<1x1xi32, #tpu.memory_space<smem>>, %arg3: memref<1xi32, #tpu.memory_space<smem>>) -> (i32, i32) {
    %c0_i32 = arith.constant 0 : i32
    %c0_i32_0 = arith.constant 0 : i32
    %c0_i32_1 = arith.constant 0 : i32
    return %c0_i32, %c0_i32_0 : i32, i32
  }
  func.func @transform_3(%arg0: i32, %arg1: i32, %arg2: memref<1x1xi32, #tpu.memory_space<smem>>, %arg3: memref<1xi32, #tpu.memory_space<smem>>) -> (i32, i32) {
    %c0_i32 = arith.constant 0 : i32
    %c0_i32_0 = arith.constant 0 : i32
    %c0_i32_1 = arith.constant 0 : i32
    return %c0_i32, %c0_i32_0 : i32, i32
  }
  func.func @transform_4(%arg0: i32, %arg1: i32, %arg2: memref<1x1xi32, #tpu.memory_space<smem>>, %arg3: memref<1xi32, #tpu.memory_space<smem>>) -> (i32, i32) {
    %c0_i32 = arith.constant 0 : i32
    %c0_i32_0 = arith.constant 0 : i32
    return %arg0, %c0_i32 : i32, i32
  }
}

</mosaic_0001>

<llo_original>
// kernel: _gcn_forward.1
$region0: #{_gcn_forward.1}
  #allocation0 [shape = 'u32[]', space=smem, size = 0x4, offset = 0x4, fixed_abs, tag = 'smem constant byte address 0x4 - core index']
  #allocation1 [shape = 'u32[144,128]{1,0:T(1,128)}', space=vmem, size = 0x12000, scoped, tag = 'internal scratch']
  #allocation2 [shape = 'f32[128,128]{1,0:T(8,128)}', space=vmem, size = 0x10000, scoped, tag = 'scratch operand']
  #allocation3 [shape = 's32[1]{0}', space=sflag, size = 0x4, scoped, tag = 'scoped memory for _gcn_forward.1']
  #allocation4 [shape = 's32[1,1]{1,0:T(1,128)S(6)}', space=smem, size = 0x200, scoped, tag = 'prefetched SMEM operand 0']
  #allocation5 [shape = 's32[1]{0:T(128)S(6)}', space=smem, size = 0x200, scoped, tag = 'prefetched SMEM operand 1']
  %s0 = inlined_call_operand.<no memory space> [shape: s32[1,1], index: 0, kind: input, shape index: {}]
  %s1 = inlined_call_operand.<no memory space> [shape: s32[1], index: 1, kind: input, shape index: {}]
  %s2 = inlined_call_operand.vmem [shape: s8[128,128], index: 2, kind: input, shape index: {}]
  %s3 = inlined_call_operand.vmem [shape: bf16[128,128], index: 3, kind: input, shape index: {}]
  %s4 = inlined_call_operand.vmem [shape: f32[128,128], index: 4, kind: input, shape index: {}]
  %s5 = inlined_call_operand.vmem [shape: f32[1,128], index: 5, kind: input, shape index: {}]
  %s6 = inlined_call_operand.vmem [shape: f32[128,128], index: 6, kind: output, shape index: {}]
  %s7 = sld [smem:[#allocation0]]
  $region42: #{_gcn_forward.1} parent=0
    _
  %s9 = ssub.s32 1, %s7
  %s10 = scalar_select 0, %s9, %s7
  %11 = sst [smem:[#allocation4]] %s0
  %12 = sst [smem:[#allocation5]] %s1
  // Predicated region
  $region2: #{_gcn_forward.1} parent=0 // pred_check
    _
  $region3: #{_gcn_forward.1} parent=0 // pred_check_branch
    %14 = sbr.rel (0) target = $region5
  $region4: #{_gcn_forward.1} parent=0 // pred_region
    %s15 = sadd.s32 0, 0
    %s16 = smul.u32 %s15, 128
    %s17 = sadd.s32 %s16, 0
    %s18 = sld [smem:[#allocation4 + %s17]]
    %p19 = scmp.lt.s32.totalorder %s18, 0
    %s20 = scalar_select %p19, %s18, 0
    %s21 = smul.addr %s20, 8
    %s22 = scalar_lea.vmem %s2, %s21
    %s23 = sadd.s32 0, 0
    %s24 = smul.u32 %s23, 128
    %s25 = sadd.s32 %s24, 0
    %s26 = sld [smem:[#allocation4 + %s25]]
  $region5: #{_gcn_forward.1} parent=0 // pred_fallthru
    _
  // Predicated region
  $region6: #{_gcn_forward.1} parent=0 // pred_check
    _
  $region7: #{_gcn_forward.1} parent=0 // pred_check_branch
    %28 = sbr.rel (0) target = $region9
  $region8: #{_gcn_forward.1} parent=0 // pred_region
    _
  $region9: #{_gcn_forward.1} parent=0 // pred_fallthru
    _
  // Predicated region
  $region10: #{_gcn_forward.1} parent=0 // pred_check
    _
  $region11: #{_gcn_forward.1} parent=0 // pred_check_branch
    %30 = sbr.rel (0) target = $region13
  $region12: #{_gcn_forward.1} parent=0 // pred_region
    _
  $region13: #{_gcn_forward.1} parent=0 // pred_fallthru
    _
  // Predicated region
  $region14: #{_gcn_forward.1} parent=0 // pred_check
    _
  $region15: #{_gcn_forward.1} parent=0 // pred_check_branch
    %32 = sbr.rel (0) target = $region17
  $region16: #{_gcn_forward.1} parent=0 // pred_region
    _
  $region17: #{_gcn_forward.1} parent=0 // pred_fallthru
    _
  %s33 = sadd.s32 0, 0
  %s34 = smul.u32 %s33, 128
  %s35 = sadd.s32 %s34, 0
  %s36 = sld [smem:[#allocation4 + %s35]]
  %p37 = scmp.lt.s32.totalorder %s36, 0
  %s38 = scalar_select %p37, %s36, 0
  %s39 = smul.addr %s38, 8
  %s40 = scalar_lea.vmem %s2, %s39
  %s41 = sadd.s32 0, 0
  %s42 = smul.u32 %s41, 128
  %s43 = sadd.s32 %s42, 0
  %s44 = sld [smem:[#allocation4 + %s43]]
  %p45 = scmp.lt.s32.totalorder %s44, 0
  %s46 = scalar_select %p45, %s44, 0
  %s47 = smul.addr %s46, 8
  %s48 = scalar_lea.vmem %s2, %s47
  %s49 = sadd.s32 0, 0
  %s50 = smul.u32 %s49, 128
  %s51 = sadd.s32 %s50, 0
  %s52 = sld [smem:[#allocation4 + %s51]]
  %s54 = sld [smem:[#allocation5]]
  %p55 = scmp.eq.s32.totalorder 0, 0
  %p56 = scmp.gt.s32.totalorder %s54, 0
  %p57 = pnand %p55, %p56
  %p58 = pneg %p57
  // Predicated region
  $region18: #{_gcn_forward.1} parent=0 // pred_check
    _
  $region19: #{_gcn_forward.1} parent=0 // pred_check_branch
    %60 = sbr.rel (%p57) target = $region21
  $region20: #{_gcn_forward.1} parent=0 // pred_region
    %v61 = vld [vmem:[%s48] sm:$0xff]
    %v62 = vld [vmem:[%s48 + $0x8] sm:$0xff]
    %v63 = vld [vmem:[%s48 + $0x10] sm:$0xff]
    %v64 = vld [vmem:[%s48 + $0x18] sm:$0xff]
    %v65 = vunpack.c.l.s8.bf16 %v61
    %v66 = vunpack.c.h.s8.bf16 %v61
    %v67 = vunpack.c.l.s8.bf16 %v62
    %v68 = vunpack.c.h.s8.bf16 %v62
    %v69 = vunpack.c.l.s8.bf16 %v63
    %v70 = vunpack.c.h.s8.bf16 %v63
    %v71 = vunpack.c.l.s8.bf16 %v64
    %v72 = vunpack.c.h.s8.bf16 %v64
    %s73 = sadd.s32 0, 0
    %s74 = smul.u32 %s73, 128
    %s75 = sadd.s32 %s74, 0
    %s76 = sld [smem:[#allocation4 + %s75]]
    %s77 = smul.u32 %s76, 128
    %s78 = sshra.s32 %s77, 3
    %s79 = sand.u32 %s77, 7
    %s80 = smul.addr %s78, 4
    %s81 = scalar_lea.vmem %s3, %s80
    %v82 = vld [vmem:[%s81] sm:$0xf]
    %v83 = vld [vmem:[%s81 + $0x4] sm:$0xf]
    %v84 = vld [vmem:[%s81 + $0x8] sm:$0xf]
    %v85 = vld [vmem:[%s81 + $0xc] sm:$0xf]
    %v86 = vld [vmem:[%s81 + $0x10] sm:$0xf]
    %v87 = vld [vmem:[%s81 + $0x14] sm:$0xf]
    %v88 = vld [vmem:[%s81 + $0x18] sm:$0xf]
    %v89 = vld [vmem:[%s81 + $0x1c] sm:$0xf]
    %v90 = vld [vmem:[%s81 + $0x20] sm:$0xf]
    %v91 = vld [vmem:[%s81 + $0x24] sm:$0xf]
    %v92 = vld [vmem:[%s81 + $0x28] sm:$0xf]
    %v93 = vld [vmem:[%s81 + $0x2c] sm:$0xf]
    %v94 = vld [vmem:[%s81 + $0x30] sm:$0xf]
    %v95 = vld [vmem:[%s81 + $0x34] sm:$0xf]
    %v96 = vld [vmem:[%s81 + $0x38] sm:$0xf]
    %v97 = vld [vmem:[%s81 + $0x3c] sm:$0xf]
    %v114 = vunpack.c.l.b16 %v82
    %v115 = vunpack.c.l.b16 %v83
    %v116 = vunpack.c.l.b16 %v84
    %v117 = vunpack.c.l.b16 %v85
    %v118 = vunpack.c.l.b16 %v86
    %v119 = vunpack.c.l.b16 %v87
    %v120 = vunpack.c.l.b16 %v88
    %v121 = vunpack.c.l.b16 %v89
    %v122 = vunpack.c.l.b16 %v90
    %v123 = vunpack.c.l.b16 %v91
    %v124 = vunpack.c.l.b16 %v92
    %v125 = vunpack.c.l.b16 %v93
    %v126 = vunpack.c.l.b16 %v94
    %v127 = vunpack.c.l.b16 %v95
    %v128 = vunpack.c.l.b16 %v96
    %v129 = vunpack.c.l.b16 %v97
    %v130 = vpack.c.b16 %v115, %v114
    %v131 = vpack.c.b16 %v117, %v116
    %v132 = vpack.c.b16 %v119, %v118
    %v133 = vpack.c.b16 %v121, %v120
    %v134 = vpack.c.b16 %v123, %v122
    %v135 = vpack.c.b16 %v125, %v124
    %v136 = vpack.c.b16 %v127, %v126
    %v137 = vpack.c.b16 %v129, %v128
    %146 = vmatprep.subr.bf16.mxu0 0
    %147 = vmatpush1.bf16.msra.mxu0 %v137
    %148 = vmatprep.subr.bf16.mxu0 0
    %149 = vmatpush1.bf16.msra.mxu0 %v136
    %150 = vmatprep.subr.bf16.mxu0 0
    %151 = vmatpush1.bf16.msra.mxu0 %v135
    %152 = vmatprep.subr.bf16.mxu0 0
    %153 = vmatpush1.bf16.msra.mxu0 %v134
    %154 = vmatprep.subr.bf16.mxu0 0
    %155 = vmatpush1.bf16.msra.mxu0 %v133
    %156 = vmatprep.subr.bf16.mxu0 0
    %157 = vmatpush1.bf16.msra.mxu0 %v132
    %158 = vmatprep.subr.bf16.mxu0 0
    %159 = vmatpush1.bf16.msra.mxu0 %v131
    %160 = vmatprep.subr.bf16.mxu0 0
    %161 = vmatpush1.bf16.msra.mxu0 %v130
    %162 = vmatprep.subr.bf16.mxu0 0
    %163 = vmatpush2.bf16.msra.mxu0 0
    %164 = vmatprep.subr.bf16.mxu0 0
    %165 = vmatpush2.bf16.msra.mxu0 0
    %166 = vmatprep.subr.bf16.mxu0 0
    %167 = vmatpush2.bf16.msra.mxu0 0
    %168 = vmatprep.subr.bf16.mxu0 0
    %169 = vmatpush2.bf16.msra.mxu0 0
    %170 = vmatprep.subr.bf16.mxu0 0
    %171 = vmatpush2.bf16.msra.mxu0 0
    %172 = vmatprep.subr.bf16.mxu0 0
    %173 = vmatpush2.bf16.msra.mxu0 0
    %174 = vmatprep.subr.bf16.mxu0 0
    %175 = vmatpush2.bf16.msra.mxu0 0
    %176 = vmatprep.subr.bf16.mxu0 0
    %177 = vmatpush2.bf16.msra.mxu0 0
    %178 = vmatprep.mubr.bf16.mxu0 0
    %179 = vmatmul.mubr.bf16.gmra.mxu0 %v65
    %v180 = vpop.f32.mrf.mxu0
    %v181 = vadd.f32 0.0, %v180
    %v182 = vpop.f32.mrf.mxu0
    %v183 = vpop.f32.mrf.mxu0
    %v184 = vadd.f32 0.0, %v183
    %v185 = vpop.f32.mrf.mxu0
    %186 = vmatprep.mubr.bf16.mxu0 0
    %187 = vmatmul.mubr.bf16.gmra.mxu0 %v66
    %v188 = vpop.f32.mrf.mxu0
    %v189 = vadd.f32 0.0, %v188
    %v190 = vpop.f32.mrf.mxu0
    %v191 = vpop.f32.mrf.mxu0
    %v192 = vadd.f32 0.0, %v191
    %v193 = vpop.f32.mrf.mxu0
    %194 = vmatprep.mubr.bf16.mxu0 0
    %195 = vmatmul.mubr.bf16.gmra.mxu0 %v67
    %v196 = vpop.f32.mrf.mxu0
    %v197 = vadd.f32 0.0, %v196
    %v198 = vpop.f32.mrf.mxu0
    %v199 = vpop.f32.mrf.mxu0
    %v200 = vadd.f32 0.0, %v199
    %v201 = vpop.f32.mrf.mxu0
    %202 = vmatprep.mubr.bf16.mxu0 0
    %203 = vmatmul.mubr.bf16.gmra.mxu0 %v68
    %v204 = vpop.f32.mrf.mxu0
    %v205 = vadd.f32 0.0, %v204
    %v206 = vpop.f32.mrf.mxu0
    %v207 = vpop.f32.mrf.mxu0
    %v208 = vadd.f32 0.0, %v207
    %v209 = vpop.f32.mrf.mxu0
    %210 = vmatprep.mubr.bf16.mxu0 0
    %211 = vmatmul.mubr.bf16.gmra.mxu0 %v69
    %v212 = vpop.f32.mrf.mxu0
    %v213 = vadd.f32 0.0, %v212
    %v214 = vpop.f32.mrf.mxu0
    %v215 = vpop.f32.mrf.mxu0
    %v216 = vadd.f32 0.0, %v215
    %v217 = vpop.f32.mrf.mxu0
    %218 = vmatprep.mubr.bf16.mxu0 0
    %219 = vmatmul.mubr.bf16.gmra.mxu0 %v70
    %v220 = vpop.f32.mrf.mxu0
    %v221 = vadd.f32 0.0, %v220
    %v222 = vpop.f32.mrf.mxu0
    %v223 = vpop.f32.mrf.mxu0
    %v224 = vadd.f32 0.0, %v223
    %v225 = vpop.f32.mrf.mxu0
    %226 = vmatprep.mubr.bf16.mxu0 0
    %227 = vmatmul.mubr.bf16.gmra.mxu0 %v71
    %v228 = vpop.f32.mrf.mxu0
    %v229 = vadd.f32 0.0, %v228
    %v230 = vpop.f32.mrf.mxu0
    %v231 = vpop.f32.mrf.mxu0
    %v232 = vadd.f32 0.0, %v231
    %v233 = vpop.f32.mrf.mxu0
    %234 = vmatprep.mubr.bf16.mxu0 0
    %235 = vmatmul.mubr.bf16.gmra.mxu0 %v72
    %v236 = vpop.f32.mrf.mxu0
    %v237 = vadd.f32 0.0, %v236
    %v238 = vpop.f32.mrf.mxu0
    %v239 = vpop.f32.mrf.mxu0
    %v240 = vadd.f32 0.0, %v239
    %v241 = vpop.f32.mrf.mxu0
    %242 = vdwg.mxu0
    %243 = vst [vmem:[#allocation2] sm:$0xff] %v181
    %244 = vst [vmem:[#allocation2 + $0x8] sm:$0xff] %v184
    %245 = vst [vmem:[#allocation2 + $0x10] sm:$0xff] %v189
    %246 = vst [vmem:[#allocation2 + $0x18] sm:$0xff] %v192
    %247 = vst [vmem:[#allocation2 + $0x20] sm:$0xff] %v197
    %248 = vst [vmem:[#allocation2 + $0x28] sm:$0xff] %v200
    %249 = vst [vmem:[#allocation2 + $0x30] sm:$0xff] %v205
    %250 = vst [vmem:[#allocation2 + $0x38] sm:$0xff] %v208
    %251 = vst [vmem:[#allocation2 + $0x40] sm:$0xff] %v213
    %252 = vst [vmem:[#allocation2 + $0x48] sm:$0xff] %v216
    %253 = vst [vmem:[#allocation2 + $0x50] sm:$0xff] %v221
    %254 = vst [vmem:[#allocation2 + $0x58] sm:$0xff] %v224
    %255 = vst [vmem:[#allocation2 + $0x60] sm:$0xff] %v229
    %256 = vst [vmem:[#allocation2 + $0x68] sm:$0xff] %v232
    %257 = vst [vmem:[#allocation2 + $0x70] sm:$0xff] %v237
    %258 = vst [vmem:[#allocation2 + $0x78] sm:$0xff] %v240
  $region21: #{_gcn_forward.1} parent=0 // pred_fallthru
    _
  %p259 = scmp.eq.s32.totalorder %s54, 0
  %p260 = pnand %p55, %p259
  %p261 = pneg %p260
  // Predicated region
  $region22: #{_gcn_forward.1} parent=0 // pred_check
    _
  $region23: #{_gcn_forward.1} parent=0 // pred_check_branch
    %263 = sbr.rel (%p260) target = $region25
  $region24: #{_gcn_forward.1} parent=0 // pred_region
    %264 = vst [vmem:[#allocation2] sm:$0xff] 0.0
    %265 = vst [vmem:[#allocation2 + $0x8] sm:$0xff] 0.0
    %266 = vst [vmem:[#allocation2 + $0x10] sm:$0xff] 0.0
    %267 = vst [vmem:[#allocation2 + $0x18] sm:$0xff] 0.0
    %268 = vst [vmem:[#allocation2 + $0x20] sm:$0xff] 0.0
    %269 = vst [vmem:[#allocation2 + $0x28] sm:$0xff] 0.0
    %270 = vst [vmem:[#allocation2 + $0x30] sm:$0xff] 0.0
    %271 = vst [vmem:[#allocation2 + $0x38] sm:$0xff] 0.0
    %272 = vst [vmem:[#allocation2 + $0x40] sm:$0xff] 0.0
    %273 = vst [vmem:[#allocation2 + $0x48] sm:$0xff] 0.0
    %274 = vst [vmem:[#allocation2 + $0x50] sm:$0xff] 0.0
    %275 = vst [vmem:[#allocation2 + $0x58] sm:$0xff] 0.0
    %276 = vst [vmem:[#allocation2 + $0x60] sm:$0xff] 0.0
    %277 = vst [vmem:[#allocation2 + $0x68] sm:$0xff] 0.0
    %278 = vst [vmem:[#allocation2 + $0x70] sm:$0xff] 0.0
    %279 = vst [vmem:[#allocation2 + $0x78] sm:$0xff] 0.0
  $region25: #{_gcn_forward.1} parent=0 // pred_fallthru
    _
  %p280 = scmp.gt.s32.totalorder 0, 0
  %p281 = scmp.lt.s32.totalorder 0, %s54
  %p282 = pnand %p280, %p281
  %p283 = pneg %p282
  // Predicated region
  $region26: #{_gcn_forward.1} parent=0 // pred_check
    _
  $region27: #{_gcn_forward.1} parent=0 // pred_check_branch
    %285 = sbr.rel (%p282) target = $region29
  $region28: #{_gcn_forward.1} parent=0 // pred_region
    %v286 = vld [vmem:[#allocation2] sm:$0xff]
    %v287 = vld [vmem:[#allocation2 + $0x8] sm:$0xff]
    %v288 = vld [vmem:[#allocation2 + $0x10] sm:$0xff]
    %v289 = vld [vmem:[#allocation2 + $0x18] sm:$0xff]
    %v290 = vld [vmem:[#allocation2 + $0x20] sm:$0xff]
    %v291 = vld [vmem:[#allocation2 + $0x28] sm:$0xff]
    %v292 = vld [vmem:[#allocation2 + $0x30] sm:$0xff]
    %v293 = vld [vmem:[#allocation2 + $0x38] sm:$0xff]
    %v294 = vld [vmem:[#allocation2 + $0x40] sm:$0xff]
    %v295 = vld [vmem:[#allocation2 + $0x48] sm:$0xff]
    %v296 = vld [vmem:[#allocation2 + $0x50] sm:$0xff]
    %v297 = vld [vmem:[#allocation2 + $0x58] sm:$0xff]
    %v298 = vld [vmem:[#allocation2 + $0x60] sm:$0xff]
    %v299 = vld [vmem:[#allocation2 + $0x68] sm:$0xff]
    %v300 = vld [vmem:[#allocation2 + $0x70] sm:$0xff]
    %v301 = vld [vmem:[#allocation2 + $0x78] sm:$0xff]
    %v302 = vld [vmem:[%s48] sm:$0xff]
    %v303 = vld [vmem:[%s48 + $0x8] sm:$0xff]
    %v304 = vld [vmem:[%s48 + $0x10] sm:$0xff]
    %v305 = vld [vmem:[%s48 + $0x18] sm:$0xff]
    %v306 = vunpack.c.l.s8.bf16 %v302
    %v307 = vunpack.c.h.s8.bf16 %v302
    %v308 = vunpack.c.l.s8.bf16 %v303
    %v309 = vunpack.c.h.s8.bf16 %v303
    %v310 = vunpack.c.l.s8.bf16 %v304
    %v311 = vunpack.c.h.s8.bf16 %v304
    %v312 = vunpack.c.l.s8.bf16 %v305
    %v313 = vunpack.c.h.s8.bf16 %v305
    %s314 = sadd.s32 0, 0
    %s315 = smul.u32 %s314, 128
    %s316 = sadd.s32 %s315, 0
    %s317 = sld [smem:[#allocation4 + %s316]]
    %s318 = smul.u32 %s317, 128
    %s319 = sshra.s32 %s318, 3
    %s320 = sand.u32 %s318, 7
    %s321 = smul.addr %s319, 4
    %s322 = scalar_lea.vmem %s3, %s321
    %v323 = vld [vmem:[%s322] sm:$0xf]
    %v324 = vld [vmem:[%s322 + $0x4] sm:$0xf]
    %v325 = vld [vmem:[%s322 + $0x8] sm:$0xf]
    %v326 = vld [vmem:[%s322 + $0xc] sm:$0xf]
    %v327 = vld [vmem:[%s322 + $0x10] sm:$0xf]
    %v328 = vld [vmem:[%s322 + $0x14] sm:$0xf]
    %v329 = vld [vmem:[%s322 + $0x18] sm:$0xf]
    %v330 = vld [vmem:[%s322 + $0x1c] sm:$0xf]
    %v331 = vld [vmem:[%s322 + $0x20] sm:$0xf]
    %v332 = vld [vmem:[%s322 + $0x24] sm:$0xf]
    %v333 = vld [vmem:[%s322 + $0x28] sm:$0xf]
    %v334 = vld [vmem:[%s322 + $0x2c] sm:$0xf]
    %v335 = vld [vmem:[%s322 + $0x30] sm:$0xf]
    %v336 = vld [vmem:[%s322 + $0x34] sm:$0xf]
    %v337 = vld [vmem:[%s322 + $0x38] sm:$0xf]
    %v338 = vld [vmem:[%s322 + $0x3c] sm:$0xf]
    %v355 = vunpack.c.l.b16 %v323
    %v356 = vunpack.c.l.b16 %v324
    %v357 = vunpack.c.l.b16 %v325
    %v358 = vunpack.c.l.b16 %v326
    %v359 = vunpack.c.l.b16 %v327
    %v360 = vunpack.c.l.b16 %v328
    %v361 = vunpack.c.l.b16 %v329
    %v362 = vunpack.c.l.b16 %v330
    %v363 = vunpack.c.l.b16 %v331
    %v364 = vunpack.c.l.b16 %v332
    %v365 = vunpack.c.l.b16 %v333
    %v366 = vunpack.c.l.b16 %v334
    %v367 = vunpack.c.l.b16 %v335
    %v368 = vunpack.c.l.b16 %v336
    %v369 = vunpack.c.l.b16 %v337
    %v370 = vunpack.c.l.b16 %v338
    %v371 = vpack.c.b16 %v356, %v355
    %v372 = vpack.c.b16 %v358, %v357
    %v373 = vpack.c.b16 %v360, %v359
    %v374 = vpack.c.b16 %v362, %v361
    %v375 = vpack.c.b16 %v364, %v363
    %v376 = vpack.c.b16 %v366, %v365
    %v377 = vpack.c.b16 %v368, %v367
    %v378 = vpack.c.b16 %v370, %v369
    %387 = vmatprep.subr.bf16.mxu0 0
    %388 = vmatpush1.bf16.msra.mxu0 %v378
    %389 = vmatprep.subr.bf16.mxu0 0
    %390 = vmatpush1.bf16.msra.mxu0 %v377
    %391 = vmatprep.subr.bf16.mxu0 0
    %392 = vmatpush1.bf16.msra.mxu0 %v376
    %393 = vmatprep.subr.bf16.mxu0 0
    %394 = vmatpush1.bf16.msra.mxu0 %v375
    %395 = vmatprep.subr.bf16.mxu0 0
    %396 = vmatpush1.bf16.msra.mxu0 %v374
    %397 = vmatprep.subr.bf16.mxu0 0
    %398 = vmatpush1.bf16.msra.mxu0 %v373
    %399 = vmatprep.subr.bf16.mxu0 0
    %400 = vmatpush1.bf16.msra.mxu0 %v372
    %401 = vmatprep.subr.bf16.mxu0 0
    %402 = vmatpush1.bf16.msra.mxu0 %v371
    %403 = vmatprep.subr.bf16.mxu0 0
    %404 = vmatpush2.bf16.msra.mxu0 0
    %405 = vmatprep.subr.bf16.mxu0 0
    %406 = vmatpush2.bf16.msra.mxu0 0
    %407 = vmatprep.subr.bf16.mxu0 0
    %408 = vmatpush2.bf16.msra.mxu0 0
    %409 = vmatprep.subr.bf16.mxu0 0
    %410 = vmatpush2.bf16.msra.mxu0 0
    %411 = vmatprep.subr.bf16.mxu0 0
    %412 = vmatpush2.bf16.msra.mxu0 0
    %413 = vmatprep.subr.bf16.mxu0 0
    %414 = vmatpush2.bf16.msra.mxu0 0
    %415 = vmatprep.subr.bf16.mxu0 0
    %416 = vmatpush2.bf16.msra.mxu0 0
    %417 = vmatprep.subr.bf16.mxu0 0
    %418 = vmatpush2.bf16.msra.mxu0 0
    %419 = vmatprep.mubr.bf16.mxu0 0
    %420 = vmatmul.mubr.bf16.gmra.mxu0 %v306
    %v421 = vpop.f32.mrf.mxu0
    %v422 = vadd.f32 0.0, %v421
    %v423 = vpop.f32.mrf.mxu0
    %v424 = vpop.f32.mrf.mxu0
    %v425 = vadd.f32 0.0, %v424
    %v426 = vpop.f32.mrf.mxu0
    %427 = vmatprep.mubr.bf16.mxu0 0
    %428 = vmatmul.mubr.bf16.gmra.mxu0 %v307
    %v429 = vpop.f32.mrf.mxu0
    %v430 = vadd.f32 0.0, %v429
    %v431 = vpop.f32.mrf.mxu0
    %v432 = vpop.f32.mrf.mxu0
    %v433 = vadd.f32 0.0, %v432
    %v434 = vpop.f32.mrf.mxu0
    %435 = vmatprep.mubr.bf16.mxu0 0
    %436 = vmatmul.mubr.bf16.gmra.mxu0 %v308
    %v437 = vpop.f32.mrf.mxu0
    %v438 = vadd.f32 0.0, %v437
    %v439 = vpop.f32.mrf.mxu0
    %v440 = vpop.f32.mrf.mxu0
    %v441 = vadd.f32 0.0, %v440
    %v442 = vpop.f32.mrf.mxu0
    %443 = vmatprep.mubr.bf16.mxu0 0
    %444 = vmatmul.mubr.bf16.gmra.mxu0 %v309
    %v445 = vpop.f32.mrf.mxu0
    %v446 = vadd.f32 0.0, %v445
    %v447 = vpop.f32.mrf.mxu0
    %v448 = vpop.f32.mrf.mxu0
    %v449 = vadd.f32 0.0, %v448
    %v450 = vpop.f32.mrf.mxu0
    %451 = vmatprep.mubr.bf16.mxu0 0
    %452 = vmatmul.mubr.bf16.gmra.mxu0 %v310
    %v453 = vpop.f32.mrf.mxu0
    %v454 = vadd.f32 0.0, %v453
    %v455 = vpop.f32.mrf.mxu0
    %v456 = vpop.f32.mrf.mxu0
    %v457 = vadd.f32 0.0, %v456
    %v458 = vpop.f32.mrf.mxu0
    %459 = vmatprep.mubr.bf16.mxu0 0
    %460 = vmatmul.mubr.bf16.gmra.mxu0 %v311
    %v461 = vpop.f32.mrf.mxu0
    %v462 = vadd.f32 0.0, %v461
    %v463 = vpop.f32.mrf.mxu0
    %v464 = vpop.f32.mrf.mxu0
    %v465 = vadd.f32 0.0, %v464
    %v466 = vpop.f32.mrf.mxu0
    %467 = vmatprep.mubr.bf16.mxu0 0
    %468 = vmatmul.mubr.bf16.gmra.mxu0 %v312
    %v469 = vpop.f32.mrf.mxu0
    %v470 = vadd.f32 0.0, %v469
    %v471 = vpop.f32.mrf.mxu0
    %v472 = vpop.f32.mrf.mxu0
    %v473 = vadd.f32 0.0, %v472
    %v474 = vpop.f32.mrf.mxu0
    %475 = vmatprep.mubr.bf16.mxu0 0
    %476 = vmatmul.mubr.bf16.gmra.mxu0 %v313
    %v477 = vpop.f32.mrf.mxu0
    %v478 = vadd.f32 0.0, %v477
    %v479 = vpop.f32.mrf.mxu0
    %v480 = vpop.f32.mrf.mxu0
    %v481 = vadd.f32 0.0, %v480
    %v482 = vpop.f32.mrf.mxu0
    %483 = vdwg.mxu0
    %v484 = vadd.f32 %v286, %v422
    %v485 = vadd.f32 %v287, %v425
    %v486 = vadd.f32 %v288, %v430
    %v487 = vadd.f32 %v289, %v433
    %v488 = vadd.f32 %v290, %v438
    %v489 = vadd.f32 %v291, %v441
    %v490 = vadd.f32 %v292, %v446
    %v491 = vadd.f32 %v293, %v449
    %v492 = vadd.f32 %v294, %v454
    %v493 = vadd.f32 %v295, %v457
    %v494 = vadd.f32 %v296, %v462
    %v495 = vadd.f32 %v297, %v465
    %v496 = vadd.f32 %v298, %v470
    %v497 = vadd.f32 %v299, %v473
    %v498 = vadd.f32 %v300, %v478
    %v499 = vadd.f32 %v301, %v481
    %500 = vst [vmem:[#allocation2] sm:$0xff] %v484
    %501 = vst [vmem:[#allocation2 + $0x8] sm:$0xff] %v485
    %502 = vst [vmem:[#allocation2 + $0x10] sm:$0xff] %v486
    %503 = vst [vmem:[#allocation2 + $0x18] sm:$0xff] %v487
    %504 = vst [vmem:[#allocation2 + $0x20] sm:$0xff] %v488
    %505 = vst [vmem:[#allocation2 + $0x28] sm:$0xff] %v489
    %506 = vst [vmem:[#allocation2 + $0x30] sm:$0xff] %v490
    %507 = vst [vmem:[#allocation2 + $0x38] sm:$0xff] %v491
    %508 = vst [vmem:[#allocation2 + $0x40] sm:$0xff] %v492
    %509 = vst [vmem:[#allocation2 + $0x48] sm:$0xff] %v493
    %510 = vst [vmem:[#allocation2 + $0x50] sm:$0xff] %v494
    %511 = vst [vmem:[#allocation2 + $0x58] sm:$0xff] %v495
    %512 = vst [vmem:[#allocation2 + $0x60] sm:$0xff] %v496
    %513 = vst [vmem:[#allocation2 + $0x68] sm:$0xff] %v497
    %514 = vst [vmem:[#allocation2 + $0x70] sm:$0xff] %v498
    %515 = vst [vmem:[#allocation2 + $0x78] sm:$0xff] %v499
  $region29: #{_gcn_forward.1} parent=0 // pred_fallthru
    _
  // Predicated region
  $region30: #{_gcn_forward.1} parent=0 // pred_check
    %p516 = pneg %p55
  $region31: #{_gcn_forward.1} parent=0 // pred_check_branch
    %518 = sbr.rel (%p516) target = $region33
  $region32: #{_gcn_forward.1} parent=0 // pred_region
    %v519 = vld [vmem:[#allocation2] sm:$0xff]
    %v520 = vld [vmem:[#allocation2 + $0x8] sm:$0xff]
    %v521 = vld [vmem:[#allocation2 + $0x10] sm:$0xff]
    %v522 = vld [vmem:[#allocation2 + $0x18] sm:$0xff]
    %v523 = vld [vmem:[#allocation2 + $0x20] sm:$0xff]
    %v524 = vld [vmem:[#allocation2 + $0x28] sm:$0xff]
    %v525 = vld [vmem:[#allocation2 + $0x30] sm:$0xff]
    %v526 = vld [vmem:[#allocation2 + $0x38] sm:$0xff]
    %v527 = vld [vmem:[#allocation2 + $0x40] sm:$0xff]
    %v528 = vld [vmem:[#allocation2 + $0x48] sm:$0xff]
    %v529 = vld [vmem:[#allocation2 + $0x50] sm:$0xff]
    %v530 = vld [vmem:[#allocation2 + $0x58] sm:$0xff]
    %v531 = vld [vmem:[#allocation2 + $0x60] sm:$0xff]
    %v532 = vld [vmem:[#allocation2 + $0x68] sm:$0xff]
    %v533 = vld [vmem:[#allocation2 + $0x70] sm:$0xff]
    %v534 = vld [vmem:[#allocation2 + $0x78] sm:$0xff]
    %v535 = vld [vmem:[%s4] sm:$0xff]
    %v536 = vld [vmem:[%s4 + $0x8] sm:$0xff]
    %v537 = vld [vmem:[%s4 + $0x10] sm:$0xff]
    %v538 = vld [vmem:[%s4 + $0x18] sm:$0xff]
    %v539 = vld [vmem:[%s4 + $0x20] sm:$0xff]
    %v540 = vld [vmem:[%s4 + $0x28] sm:$0xff]
    %v541 = vld [vmem:[%s4 + $0x30] sm:$0xff]
    %v542 = vld [vmem:[%s4 + $0x38] sm:$0xff]
    %v543 = vld [vmem:[%s4 + $0x40] sm:$0xff]
    %v544 = vld [vmem:[%s4 + $0x48] sm:$0xff]
    %v545 = vld [vmem:[%s4 + $0x50] sm:$0xff]
    %v546 = vld [vmem:[%s4 + $0x58] sm:$0xff]
    %v547 = vld [vmem:[%s4 + $0x60] sm:$0xff]
    %v548 = vld [vmem:[%s4 + $0x68] sm:$0xff]
    %v549 = vld [vmem:[%s4 + $0x70] sm:$0xff]
    %v550 = vld [vmem:[%s4 + $0x78] sm:$0xff]
    %v551 = vld [vmem:[%s5] sm:$0x1]
    %v553 = vlaneseq
    %v554 = vshrl.u32 %v553, 7
    %v555 = vsub.s32 0, %v554
    %v556 = vrot.slane %v551, %v555
    %558 = vmatprep.subr.mxu0 0.0
    %559 = vmatpush1.msra.mxu0 %v550
    %560 = vmatprep.subr.mxu0 0.0
    %561 = vmatpush1.msra.mxu0 %v549
    %562 = vmatprep.subr.mxu0 0.0
    %563 = vmatpush1.msra.mxu0 %v548
    %564 = vmatprep.subr.mxu0 0.0
    %565 = vmatpush1.msra.mxu0 %v547
    %566 = vmatprep.subr.mxu0 0.0
    %567 = vmatpush1.msra.mxu0 %v546
    %568 = vmatprep.subr.mxu0 0.0
    %569 = vmatpush1.msra.mxu0 %v545
    %570 = vmatprep.subr.mxu0 0.0
    %571 = vmatpush1.msra.mxu0 %v544
    %572 = vmatprep.subr.mxu0 0.0
    %573 = vmatpush1.msra.mxu0 %v543
    %574 = vmatprep.subr.mxu0 0.0
    %575 = vmatpush1.msra.mxu0 %v542
    %576 = vmatprep.subr.mxu0 0.0
    %577 = vmatpush1.msra.mxu0 %v541
    %578 = vmatprep.subr.mxu0 0.0
    %579 = vmatpush1.msra.mxu0 %v540
    %580 = vmatprep.subr.mxu0 0.0
    %581 = vmatpush1.msra.mxu0 %v539
    %582 = vmatprep.subr.mxu0 0.0
    %583 = vmatpush1.msra.mxu0 %v538
    %584 = vmatprep.subr.mxu0 0.0
    %585 = vmatpush1.msra.mxu0 %v537
    %586 = vmatprep.subr.mxu0 0.0
    %587 = vmatpush1.msra.mxu0 %v536
    %588 = vmatprep.subr.mxu0 0.0
    %589 = vmatpush1.msra.mxu0 %v535
    %590 = vmatprep.subr.mxu0 0.0
    %591 = vmatpush2.msra.mxu0 0.0
    %592 = vmatprep.subr.mxu0 0.0
    %593 = vmatpush2.msra.mxu0 0.0
    %594 = vmatprep.subr.mxu0 0.0
    %595 = vmatpush2.msra.mxu0 0.0
    %596 = vmatprep.subr.mxu0 0.0
    %597 = vmatpush2.msra.mxu0 0.0
    %598 = vmatprep.subr.mxu0 0.0
    %599 = vmatpush2.msra.mxu0 0.0
    %600 = vmatprep.subr.mxu0 0.0
    %601 = vmatpush2.msra.mxu0 0.0
    %602 = vmatprep.subr.mxu0 0.0
    %603 = vmatpush2.msra.mxu0 0.0
    %604 = vmatprep.subr.mxu0 0.0
    %605 = vmatpush2.msra.mxu0 0.0
    %606 = vmatprep.subr.mxu0 0.0
    %607 = vmatpush2.msra.mxu0 0.0
    %608 = vmatprep.subr.mxu0 0.0
    %609 = vmatpush2.msra.mxu0 0.0
    %610 = vmatprep.subr.mxu0 0.0
    %611 = vmatpush2.msra.mxu0 0.0
    %612 = vmatprep.subr.mxu0 0.0
    %613 = vmatpush2.msra.mxu0 0.0
    %614 = vmatprep.subr.mxu0 0.0
    %615 = vmatpush2.msra.mxu0 0.0
    %616 = vmatprep.subr.mxu0 0.0
    %617 = vmatpush2.msra.mxu0 0.0
    %618 = vmatprep.subr.mxu0 0.0
    %619 = vmatpush2.msra.mxu0 0.0
    %620 = vmatprep.subr.mxu0 0.0
    %621 = vmatpush2.msra.mxu0 0.0
    %622 = vmatprep.mubr.f32.mxu0 0.0
    %623 = vmatmul.mubr.f32.gmra.mxu0 %v519
    %v624 = vpop.f32.mrf.mxu0
    %v625 = vadd.f32 %v556, %v624
    %v626 = vpop.f32.mrf.mxu0
    %627 = vmatprep.mubr.f32.mxu0 0.0
    %628 = vmatmul.mubr.f32.gmra.mxu0 %v520
    %v629 = vpop.f32.mrf.mxu0
    %v630 = vadd.f32 %v556, %v629
    %v631 = vpop.f32.mrf.mxu0
    %632 = vmatprep.mubr.f32.mxu0 0.0
    %633 = vmatmul.mubr.f32.gmra.mxu0 %v521
    %v634 = vpop.f32.mrf.mxu0
    %v635 = vadd.f32 %v556, %v634
    %v636 = vpop.f32.mrf.mxu0
    %637 = vmatprep.mubr.f32.mxu0 0.0
    %638 = vmatmul.mubr.f32.gmra.mxu0 %v522
    %v639 = vpop.f32.mrf.mxu0
    %v640 = vadd.f32 %v556, %v639
    %v641 = vpop.f32.mrf.mxu0
    %642 = vmatprep.mubr.f32.mxu0 0.0
    %643 = vmatmul.mubr.f32.gmra.mxu0 %v523
    %v644 = vpop.f32.mrf.mxu0
    %v645 = vadd.f32 %v556, %v644
    %v646 = vpop.f32.mrf.mxu0
    %647 = vmatprep.mubr.f32.mxu0 0.0
    %648 = vmatmul.mubr.f32.gmra.mxu0 %v524
    %v649 = vpop.f32.mrf.mxu0
    %v650 = vadd.f32 %v556, %v649
    %v651 = vpop.f32.mrf.mxu0
    %652 = vmatprep.mubr.f32.mxu0 0.0
    %653 = vmatmul.mubr.f32.gmra.mxu0 %v525
    %v654 = vpop.f32.mrf.mxu0
    %v655 = vadd.f32 %v556, %v654
    %v656 = vpop.f32.mrf.mxu0
    %657 = vmatprep.mubr.f32.mxu0 0.0
    %658 = vmatmul.mubr.f32.gmra.mxu0 %v526
    %v659 = vpop.f32.mrf.mxu0
    %v660 = vadd.f32 %v556, %v659
    %v661 = vpop.f32.mrf.mxu0
    %662 = vmatprep.mubr.f32.mxu0 0.0
    %663 = vmatmul.mubr.f32.gmra.mxu0 %v527
    %v664 = vpop.f32.mrf.mxu0
    %v665 = vadd.f32 %v556, %v664
    %v666 = vpop.f32.mrf.mxu0
    %667 = vmatprep.mubr.f32.mxu0 0.0
    %668 = vmatmul.mubr.f32.gmra.mxu0 %v528
    %v669 = vpop.f32.mrf.mxu0
    %v670 = vadd.f32 %v556, %v669
    %v671 = vpop.f32.mrf.mxu0
    %672 = vmatprep.mubr.f32.mxu0 0.0
    %673 = vmatmul.mubr.f32.gmra.mxu0 %v529
    %v674 = vpop.f32.mrf.mxu0
    %v675 = vadd.f32 %v556, %v674
    %v676 = vpop.f32.mrf.mxu0
    %677 = vmatprep.mubr.f32.mxu0 0.0
    %678 = vmatmul.mubr.f32.gmra.mxu0 %v530
    %v679 = vpop.f32.mrf.mxu0
    %v680 = vadd.f32 %v556, %v679
    %v681 = vpop.f32.mrf.mxu0
    %682 = vmatprep.mubr.f32.mxu0 0.0
    %683 = vmatmul.mubr.f32.gmra.mxu0 %v531
    %v684 = vpop.f32.mrf.mxu0
    %v685 = vadd.f32 %v556, %v684
    %v686 = vpop.f32.mrf.mxu0
    %687 = vmatprep.mubr.f32.mxu0 0.0
    %688 = vmatmul.mubr.f32.gmra.mxu0 %v532
    %v689 = vpop.f32.mrf.mxu0
    %v690 = vadd.f32 %v556, %v689
    %v691 = vpop.f32.mrf.mxu0
    %692 = vmatprep.mubr.f32.mxu0 0.0
    %693 = vmatmul.mubr.f32.gmra.mxu0 %v533
    %v694 = vpop.f32.mrf.mxu0
    %v695 = vadd.f32 %v556, %v694
    %v696 = vpop.f32.mrf.mxu0
    %697 = vmatprep.mubr.f32.mxu0 0.0
    %698 = vmatmul.mubr.f32.gmra.mxu0 %v534
    %v699 = vpop.f32.mrf.mxu0
    %v700 = vadd.f32 %v556, %v699
    %v701 = vpop.f32.mrf.mxu0
    %702 = vdwg.mxu0
    %703 = vst [vmem:[%s6] sm:$0xff] %v625
    %704 = vst [vmem:[%s6 + $0x8] sm:$0xff] %v630
    %705 = vst [vmem:[%s6 + $0x10] sm:$0xff] %v635
    %706 = vst [vmem:[%s6 + $0x18] sm:$0xff] %v640
    %707 = vst [vmem:[%s6 + $0x20] sm:$0xff] %v645
    %708 = vst [vmem:[%s6 + $0x28] sm:$0xff] %v650
    %709 = vst [vmem:[%s6 + $0x30] sm:$0xff] %v655
    %710 = vst [vmem:[%s6 + $0x38] sm:$0xff] %v660
    %711 = vst [vmem:[%s6 + $0x40] sm:$0xff] %v665
    %712 = vst [vmem:[%s6 + $0x48] sm:$0xff] %v670
    %713 = vst [vmem:[%s6 + $0x50] sm:$0xff] %v675
    %714 = vst [vmem:[%s6 + $0x58] sm:$0xff] %v680
    %715 = vst [vmem:[%s6 + $0x60] sm:$0xff] %v685
    %716 = vst [vmem:[%s6 + $0x68] sm:$0xff] %v690
    %717 = vst [vmem:[%s6 + $0x70] sm:$0xff] %v695
    %718 = vst [vmem:[%s6 + $0x78] sm:$0xff] %v700
  $region33: #{_gcn_forward.1} parent=0 // pred_fallthru
    _
  // Predicated region
  $region34: #{_gcn_forward.1} parent=0 // pred_check
    _
  $region35: #{_gcn_forward.1} parent=0 // pred_check_branch
    %720 = sbr.rel (0) target = $region37
  $region36: #{_gcn_forward.1} parent=0 // pred_region
    _
  $region37: #{_gcn_forward.1} parent=0 // pred_fallthru
    _
  // Predicated region
  $region38: #{_gcn_forward.1} parent=0 // pred_check
    _
  $region39: #{_gcn_forward.1} parent=0 // pred_check_branch
    %722 = sbr.rel (0) target = $region41
  $region40: #{_gcn_forward.1} parent=0 // pred_region
    _
  $region41: #{_gcn_forward.1} parent=0 // pred_fallthru
    _

</llo_original>
